<compile_context>
chip_gen: v6e
topology: v6e:2x2x1
jax: 0.10.0
libtpu: 0.0.40
codegen_flags: <defaults>
</compile_context>

<pallas_src>
import jax
import jax.numpy as jnp
from jax.experimental import pallas as pl
from jax.experimental.pallas import tpu as pltpu


# ----------------------------------------------------------------------------
# Host-side glue: exact Python port of token_lens_to_idxs
# ----------------------------------------------------------------------------
def token_lens_to_idxs(token_lens):
    max_token_num = max([len(x) for x in token_lens])
    max_token_len = max([max(x) for x in token_lens])
    idxs, masks = [], []
    seq_id_pad = 0
    for seq_token_lens in token_lens:
        seq_idxs, seq_masks = [], []
        offset = 0
        for token_len in seq_token_lens:
            seq_idxs.extend([i + offset for i in range(token_len)]
                            + [seq_id_pad] * (max_token_len - token_len))
            seq_masks.extend([1.0 / token_len] * token_len
                             + [0.0] * (max_token_len - token_len))
            offset += token_len
        seq_idxs.extend([seq_id_pad] * max_token_len * (max_token_num - len(seq_token_lens)))
        seq_masks.extend([0.0] * max_token_len * (max_token_num - len(seq_token_lens)))
        idxs.append(seq_idxs)
        masks.append(seq_masks)
    return idxs, masks, max_token_num, max_token_len


def _round_up(x, m):
    return (x + m - 1) // m * m


def build_scaled_aggregation_matrix(token_lens, token_ratio, num_subtokens, s_pad):
    """gather(pooled, idxs) * masks -> view(T, L, D) -> sum(2) is exactly
    W @ pooled with W[t, idx[t, j]] += mask[t, j].  token_ratio is folded in:
    W_scaled = W * ratio[None, :]  (mathematically identical since
    W @ (diag(r) @ P) == (W diag(r)) @ P).  Padded S columns are zero."""
    idxs, masks, token_num, token_len = token_lens_to_idxs([token_lens])
    idxs = jnp.asarray(idxs[0], dtype=jnp.int32)
    masks = jnp.asarray(masks[0], dtype=jnp.float32)
    rows = jnp.repeat(jnp.arange(token_num, dtype=jnp.int32), token_len)
    w = jnp.zeros((token_num, s_pad), dtype=jnp.float32)
    w = w.at[rows, idxs].add(masks)
    ratio = jnp.zeros((s_pad,), jnp.float32).at[:num_subtokens].set(
        token_ratio.astype(jnp.float32))
    w = w * ratio[None, :]
    return w, token_num, token_len


# ----------------------------------------------------------------------------
# Pallas kernel: streaming chunk-block sum (f32 accumulator) + MXU aggregation
#   grid = (D tiles [parallel], chunk-blocks [arbitrary / reduction])
# ----------------------------------------------------------------------------
def encode_kernel(h_ref, w_ref, o_ref, acc_ref):
    # h_ref:   (tC, S_pad, tD)  bf16 per-chunk-block hidden-state tile
    # w_ref:   (T_pad, S_pad)   f32 ratio-scaled aggregation weights (resident)
    # o_ref:   (T_pad, tD)      f32 sequence_output tile
    # acc_ref: (S_pad, tD)      f32 chunk-sum accumulator (VMEM scratch)
    c = pl.program_id(1)

    @pl.when(c == 0)
    def _init():
        acc_ref[...] = jnp.zeros_like(acc_ref)

    # Sum the tC chunks of this block (VPU adds); accumulate in f32.
    acc_ref[...] += jnp.sum(h_ref[...].astype(jnp.float32), axis=0)

    @pl.when(c == pl.num_programs(1) - 1)
    def _finalize():
        out = jnp.dot(w_ref[...], acc_ref[...],
                      preferred_element_type=jnp.float32)      # MXU
        # bert_dropout: identity under eval semantics.
        o_ref[...] = out.astype(o_ref.dtype)


def _pick_d_tile(d_pad):
    if d_pad >= 1024 and d_pad % 512 == 0:
        return 512
    if d_pad >= 512 and d_pad % 256 == 0:
        return 256
    return 128


def _pick_c_tile(c, s_pad, td, itemsize):
    # Target ~1 MiB per H buffer so DMA time amortizes the ~0.35 us/step
    # pipeline overhead, while keeping double-buffered VMEM bounded.
    per_chunk = s_pad * td * itemsize
    return max(1, min(c, (1 << 20) // max(1, per_chunk)))


def pipeline_stage1_encode(chunk_hidden, token_ratio, token_lens):
    """sequence_output of PipeLineStage1.forward (pooling='average', eval dropout)."""
    C, S, D = chunk_hidden.shape
    S_pad = _round_up(S, 128)   # MXU contraction dim / W lane dim
    D_pad = _round_up(D, 128)   # lane-dense loads/stores

    w_scaled, T, _ = build_scaled_aggregation_matrix(token_lens, token_ratio, S, S_pad)
    T_pad = _round_up(T, 8)     # sublane-dense output rows
    if T_pad != T:
        w_scaled = jnp.pad(w_scaled, ((0, T_pad - T), (0, 0)))

    tD = _pick_d_tile(D_pad)
    num_d = D_pad // tD
    h_bytes = chunk_hidden.dtype.itemsize

    tC = _pick_c_tile(C, S_pad, tD, h_bytes)
    C_pad = _round_up(C, tC)
    num_c = C_pad // tC

    h = chunk_hidden
    if (C_pad, S_pad, D_pad) != (C, S, D):
        # Zero padding is exact: padded chunks / rows contribute nothing to the
        # sum and padded W columns are zero.
        h = jnp.pad(h, ((0, C_pad - C), (0, S_pad - S), (0, D_pad - D)))

    # VMEM budget: double-buffered H chunk-block tiles + resident W
    # + f32 accumulator + double-buffered out tile.
    per_step_bytes = (2 * tC * S_pad * tD * h_bytes
                      + 2 * T_pad * S_pad * 4
                      + S_pad * tD * 4
                      + 2 * T_pad * tD * 4)
    vmem_limit = int(min(64 * 1024 * 1024,
                         max(16 * 1024 * 1024, 2 * per_step_bytes)))

    cost = pl.CostEstimate(
        flops=2 * T_pad * S_pad * D_pad + C_pad * S_pad * D_pad,
        transcendentals=0,
        bytes_accessed=(C_pad * S_pad * D_pad * h_bytes
                        + T_pad * S_pad * 4
                        + T_pad * D_pad * 4),
    )

    out_padded = pl.pallas_call(
        encode_kernel,
        out_shape=jax.ShapeDtypeStruct((T_pad, D_pad), jnp.float32),
        grid_spec=pltpu.PrefetchScalarGridSpec(
            num_scalar_prefetch=0,
            grid=(num_d, num_c),
            in_specs=[
                pl.BlockSpec((tC, S_pad, tD), lambda d, c: (c, 0, d)),
                pl.BlockSpec((T_pad, S_pad), lambda d, c: (0, 0)),
            ],
            out_specs=pl.BlockSpec((T_pad, tD), lambda d, c: (0, d)),
            scratch_shapes=[pltpu.VMEM((S_pad, tD), jnp.float32)],
        ),
        compiler_params=pltpu.CompilerParams(
            dimension_semantics=("parallel", "arbitrary"),
            vmem_limit_bytes=vmem_limit,
        ),
        cost_estimate=cost,
    )(h, w_scaled)

    # Slice off the exact padding (padded W rows / columns are zero).
    return out_padded[:T, :D]


if __name__ == "__main__":
    key = jax.random.PRNGKey(0)
    k1, k2 = jax.random.split(key)

    # Small synthetic shapes: 3 chunks, 16 doc subtokens, bert_dim=256.
    C, S, D = 3, 16, 256
    token_lens = [2, 1, 3, 1, 2, 1, 1, 2, 1, 2]   # sums to S=16 -> 10 tokens
    assert sum(token_lens) == S

    # Stand-in for per-chunk BERT last_hidden_state, kept in bf16 (no f32 up-cast).
    chunk_hidden = jax.random.normal(k1, (C, S, D), dtype=jnp.bfloat16)
    # lm_input['token_ratio'] (per-subtoken averaging weight across chunks).
    token_ratio = jax.random.uniform(k2, (S,), dtype=jnp.float32,
                                     minval=0.4, maxval=1.0)

    out = pipeline_stage1_encode(chunk_hidden, token_ratio, token_lens)
    out = jax.block_until_ready(out)

    # Reference (plain JAX mirror of encode_a_doc's deterministic tail).
    h_f32 = chunk_hidden.astype(jnp.float32)
    pooled_ref = jnp.sum(h_f32, axis=0) * token_ratio[:, None]
    idxs, masks, tnum, tlen = token_lens_to_idxs([token_lens])
    idxs_a = jnp.asarray(idxs[0], dtype=jnp.int32)
    masks_a = jnp.asarray(masks[0], dtype=jnp.float32)
    gathered = pooled_ref[idxs_a] * masks_a[:, None]
    ref = gathered.reshape(tnum, tlen, D).sum(1)

    assert out.shape == (tnum, D), out.shape
    assert jnp.allclose(out, ref, atol=1e-3, rtol=1e-3)

    print("KERNEL_OK")
</pallas_src>

<mosaic_0001>
module attributes {stable_mosaic.version = 11 : i64} {
  func.func @encode_kernel(%arg0: i32, %arg1: i32, %arg2: memref<3x128x128xbf16, #tpu.memory_space<vmem>>, %arg3: memref<16x128xf32, #tpu.memory_space<vmem>>, %arg4: memref<16x128xf32, #tpu.memory_space<vmem>>, %arg5: memref<128x128xf32, #tpu.memory_space<vmem>>) attributes {dimension_semantics = [#tpu.dimension_semantics<parallel>, #tpu.dimension_semantics<arbitrary>], iteration_bounds = array<i64: 2, 1>, scalar_prefetch = 0 : i64, scratch_operands = 1 : i64, tpu.core_type = #tpu.core_type<tc>, window_params = [{transform_indices = @transform_0, window_bounds = array<i64: 3, 128, 128>}, {pipeline_mode = #tpu.pipeline_mode<synchronous>, transform_indices = @transform_1, window_bounds = array<i64: 16, 128>}, {transform_indices = @transform_2, window_bounds = array<i64: 16, 128>}]} {
    %c0_i32 = arith.constant 0 : i32
    %0 = arith.cmpi eq, %arg1, %c0_i32 : i32
    %1 = arith.extui %0 : i1 to i32
    %c0_i32_0 = arith.constant 0 : i32
    %2 = arith.cmpi ne, %1, %c0_i32_0 : i32
    scf.if %2 {
      %cst_9 = arith.constant 0.000000e+00 : f32
      %12 = vector.broadcast %cst_9 : f32 to vector<128x128xf32>
      %c0_10 = arith.constant 0 : index
      %c0_11 = arith.constant 0 : index
      %13 = vector.load %arg5[%c0_10, %c0_11] : memref<128x128xf32, #tpu.memory_space<vmem>>, vector<128x128xf32>
      tpu.vector_store %arg5[%c0_10, %c0_11], %12 {strides = array<i32>} : memref<128x128xf32, #tpu.memory_space<vmem>>, vector<128x128xf32>,
    } else {
    }
    %c0 = arith.constant 0 : index
    %c0_1 = arith.constant 0 : index
    %3 = vector.load %arg5[%c0, %c0_1] : memref<128x128xf32, #tpu.memory_space<vmem>>, vector<128x128xf32>
    %c0_2 = arith.constant 0 : index
    %c0_3 = arith.constant 0 : index
    %c0_4 = arith.constant 0 : index
    %4 = vector.load %arg2[%c0_2, %c0_3, %c0_4] : memref<3x128x128xbf16, #tpu.memory_space<vmem>>, vector<3x128x128xbf16>
    %5 = arith.extf %4 : vector<3x128x128xbf16> to vector<3x128x128xf32>
    %cst = arith.constant dense<0.000000e+00> : vector<128x128xf32>
    %6 = vector.multi_reduction <add>, %5, %cst [0] : vector<3x128x128xf32> to vector<128x128xf32>
    %7 = arith.addf %3, %6 : vector<128x128xf32>
    %c0_5 = arith.constant 0 : index
    %c0_6 = arith.constant 0 : index
    %8 = vector.load %arg5[%c0_5, %c0_6] : memref<128x128xf32, #tpu.memory_space<vmem>>, vector<128x128xf32>
    tpu.vector_store %arg5[%c0_5, %c0_6], %7 {strides = array<i32>} : memref<128x128xf32, #tpu.memory_space<vmem>>, vector<128x128xf32>,
    %c0_i32_7 = arith.constant 0 : i32
    %9 = arith.cmpi eq, %arg1, %c0_i32_7 : i32
    %10 = arith.extui %9 : i1 to i32
    %c0_i32_8 = arith.constant 0 : i32
    %11 = arith.cmpi ne, %10, %c0_i32_8 : i32
    scf.if %11 {
      %c0_9 = arith.constant 0 : index
      %c0_10 = arith.constant 0 : index
      %12 = vector.load %arg3[%c0_9, %c0_10] : memref<16x128xf32, #tpu.memory_space<vmem>>, vector<16x128xf32>
      %c0_11 = arith.constant 0 : index
      %c0_12 = arith.constant 0 : index
      %13 = vector.load %arg5[%c0_11, %c0_12] : memref<128x128xf32, #tpu.memory_space<vmem>>, vector<128x128xf32>
      %cst_13 = arith.constant dense<0.000000e+00> : vector<16x128xf32>
      %14 = tpu.matmul %12, %13, %cst_13 {dimension_numbers = #tpu.dot_dimension_numbers<[1], [0], [0], [1], [0, 0, 1, 1], [], []>} : vector<16x128xf32>, vector<128x128xf32>, vector<16x128xf32> -> vector<16x128xf32>
      %c0_14 = arith.constant 0 : index
      %c0_15 = arith.constant 0 : index
      %15 = vector.load %arg4[%c0_14, %c0_15] : memref<16x128xf32, #tpu.memory_space<vmem>>, vector<16x128xf32>
      tpu.vector_store %arg4[%c0_14, %c0_15], %14 {strides = array<i32>} : memref<16x128xf32, #tpu.memory_space<vmem>>, vector<16x128xf32>,
    } else {
    }
    return
  }
  func.func @transform_0(%arg0: i32, %arg1: i32) -> (i32, i32, i32) {
    %c0_i32 = arith.constant 0 : i32
    %c0_i32_0 = arith.constant 0 : i32
    return %arg1, %c0_i32, %arg0 : i32, i32, i32
  }
  func.func @transform_1(%arg0: i32, %arg1: i32) -> (i32, i32) {
    %c0_i32 = arith.constant 0 : i32
    %c0_i32_0 = arith.constant 0 : i32
    %c0_i32_1 = arith.constant 0 : i32
    return %c0_i32, %c0_i32_0 : i32, i32
  }
  func.func @transform_2(%arg0: i32, %arg1: i32) -> (i32, i32) {
    %c0_i32 = arith.constant 0 : i32
    %c0_i32_0 = arith.constant 0 : i32
    return %c0_i32, %arg0 : i32, i32
  }
}

</mosaic_0001>

<llo_original>
// kernel: tpu_custom_call.1
$region0: #{tpu_custom_call.1}
  #allocation0 [shape = 'u32[]', space=smem, size = 0x4, offset = 0x4, fixed_abs, tag = 'smem constant byte address 0x4 - core index']
  #allocation1 [shape = 'u32[144,128]{1,0:T(1,128)}', space=vmem, size = 0x12000, scoped, tag = 'internal scratch']
  #allocation2 [shape = 'f32[128,128]{1,0:T(8,128)}', space=vmem, size = 0x10000, scoped, tag = 'scratch operand']
  %s0 = inlined_call_operand.hbm [shape: bf16[3,128,256], index: 0, kind: input, shape index: {}]
  %s1 = inlined_call_operand.hbm [shape: f32[16,128], index: 1, kind: input, shape index: {}]
  %s2 = inlined_call_operand.hbm [shape: f32[16,256], index: 2, kind: output, shape index: {}]
  %s3 = sld [smem:[#allocation0]]
  $region57: #{tpu_custom_call.1} parent=0
    _
  %s5 = ssub.s32 1, %s3
  %s6 = scalar_select 0, %s5, %s3
  $region1: #{tpu_custom_call.1} parent=0
    #allocation3 [shape = 'u8[196608]{0}', space=vmem, size = 0x30000, scoped, tag = 'input window, operand 0']
    #allocation4 [shape = 's32[2]{0}', space=sflag, size = 0x8, scoped, tag = 'scoped memory for tpu_custom_call.1']
    #allocation5 [shape = 's32[2]{0}', space=sflag, size = 0x8, scoped, tag = 'scoped memory for tpu_custom_call.1']
    #allocation6 [shape = 'u8[8192]{0}', space=vmem, size = 0x2000, scoped, tag = 'input window, operand 1, single buffered']
    #allocation7 [shape = 's32[1]{0}', space=sflag, size = 0x4, scoped, tag = 'scoped memory for tpu_custom_call.1']
    #allocation8 [shape = 'u8[16384]{0}', space=vmem, size = 0x4000, scoped, tag = 'output window, operand 0']
    %7 = vsyncpa [#allocation4], 0
    %s8 = scalar_lea.sflag [#allocation4], 1
    %9 = vsyncpa %s8, 0
    %10 = vsyncpa [#allocation7], 0
    %11 = vsyncpa [#allocation5], 0
    %s12 = scalar_lea.sflag [#allocation5], 1
    %13 = vsyncpa %s12, 0
    loop: start=0, step=1, limit=4
    $region2: #{tpu_custom_call.1} parent=1 // loop_pre_header
      _
    $region3: #{tpu_custom_call.1} parent=1 // loop_header
      %s15 = sphi 0, %s19
      %p16 = scmp.ge.s32.totalorder %s15, 4
      %s22 = sphi 0, %s34
      %s23 = sphi 0, %s30
      %s24 = sphi 0, %s22
      %s25 = sphi 0, %s23
      %s26 = sphi 0, %s24
      %s27 = sphi 0, %s25
      %s39 = sphi 0, %s41
      %s42 = sphi 0, %s39
      %s43 = sphi 0, %s42
      %s59 = sphi 0, %s43
      %s63 = sphi 0, %s63
      %s65 = sphi 0, %s63
      %s66 = sphi 0, %s65
      %s80 = sphi 0, %s66
      %s86 = sphi 0, %s88
      %s89 = sphi 0, %s86
      %s90 = sphi 0, %s89
      %s106 = sphi 0, %s90
    $region4: #{tpu_custom_call.1} parent=1 // loop_header_branch
      %18 = sbr.rel (%p16) target = $region8
    $region5: #{tpu_custom_call.1} parent=1 // loop_body
      %s20 = ssub.s32 %s15, 1
      %s21 = ssub.s32 %s15, 2
      %s28 = sadd.s32 1, %s23
      %p29 = scmp.ge.s32.totalorder %s28, 1
      %s30 = scalar_select %p29, 0, %s28
      %s31 = sadd.s32 1, %s22
      %s32 = scalar_select %p29, %s31, %s22
      %p33 = scmp.ge.s32.totalorder %s32, 2
      %s34 = scalar_select %p33, 0, %s32
      %s35 = ssub.s32 %s23, %s30
      %s36 = ssub.s32 %s22, %s34
      %s37 = sor.u32 %s35, %s36
      %p38 = scmp.eq.s32.totalorder %s37, 0
      %s40 = sadd.s32 %s39, 1
      %s41 = scalar_select %p38, %s39, %s40
      %p44 = pneg %p38
      %p45 = scmp.eq.s32.totalorder %s15, 1
      %p46 = por %p44, %p45
      %p47 = scmp.ne.s32.totalorder %s39, %s42
      %p48 = scmp.eq.s32.totalorder %s15, 0
      %p49 = por %p47, %p48
      %p50 = scmp.ne.s32.totalorder %s39, %s42
      %p51 = scmp.eq.s32.totalorder %s20, 1
      %p52 = por %p50, %p51
      %p53 = scmp.ne.s32.totalorder %s42, %s43
      %p54 = scmp.eq.s32.totalorder %s20, 0
      %p55 = por %p53, %p54
      %p56 = scmp.ne.s32.totalorder %s42, %s43
      %p57 = scmp.eq.s32.totalorder %s21, 1
      %p58 = por %p56, %p57
      %p60 = scmp.ne.s32.totalorder %s43, %s59
      %p61 = scmp.eq.s32.totalorder %s21, 0
      %p62 = por %p60, %p61
      %s64 = sadd.s32 %s63, 1
      %p67 = scmp.eq.s32.totalorder %s15, 1
      %p68 = scmp.ne.s32.totalorder %s63, %s65
      %p69 = scmp.eq.s32.totalorder %s15, 0
      %p70 = por %p68, %p69
      %p71 = scmp.ne.s32.totalorder %s63, %s65
      %p72 = scmp.eq.s32.totalorder %s20, 1
      %p73 = por %p71, %p72
      %p74 = scmp.ne.s32.totalorder %s65, %s66
      %p75 = scmp.eq.s32.totalorder %s20, 0
      %p76 = por %p74, %p75
      %p77 = scmp.ne.s32.totalorder %s65, %s66
      %p78 = scmp.eq.s32.totalorder %s21, 1
      %p79 = por %p77, %p78
      %p81 = scmp.ne.s32.totalorder %s66, %s80
      %p82 = scmp.eq.s32.totalorder %s21, 0
      %p83 = por %p81, %p82
      %s84 = ssub.s32 %s22, %s34
      %p85 = scmp.eq.s32.totalorder %s84, 0
      %s87 = sadd.s32 %s86, 1
      %s88 = scalar_select %p85, %s86, %s87
      %p91 = pneg %p85
      %p92 = scmp.eq.s32.totalorder %s15, 1
      %p93 = por %p91, %p92
      %p94 = scmp.ne.s32.totalorder %s86, %s89
      %p95 = scmp.eq.s32.totalorder %s15, 0
      %p96 = por %p94, %p95
      %p97 = scmp.ne.s32.totalorder %s86, %s89
      %p98 = scmp.eq.s32.totalorder %s20, 1
      %p99 = por %p97, %p98
      %p100 = scmp.ne.s32.totalorder %s89, %s90
      %p101 = scmp.eq.s32.totalorder %s20, 0
      %p102 = por %p100, %p101
      %p103 = scmp.ne.s32.totalorder %s89, %s90
      %p104 = scmp.eq.s32.totalorder %s21, 1
      %p105 = por %p103, %p104
      %p107 = scmp.ne.s32.totalorder %s90, %s106
      %p108 = scmp.eq.s32.totalorder %s21, 0
      %p109 = por %p107, %p108
      %p110 = scmp.le.s32.totalorder 1, %s15
      %p111 = scmp.lt.s32.totalorder %s15, 3
      %p112 = pnand %p110, %p111
      %p113 = pneg %p112
      // Predicated region
      $region9: #{tpu_custom_call.1} parent=5 // pred_check
        _
      $region10: #{tpu_custom_call.1} parent=5 // pred_check_branch
        %115 = sbr.rel (%p112) target = $region12
      $region11: #{tpu_custom_call.1} parent=5 // pred_region
        %s116 = ssub.s32 %s15, 1
        // Predicated region
        $region13: #{tpu_custom_call.1} parent=11 // pred_check
          %p117 = pneg %p76
        $region14: #{tpu_custom_call.1} parent=11 // pred_check_branch
          %119 = sbr.rel (%p117) target = $region16
        $region15: #{tpu_custom_call.1} parent=11 // pred_region
          %s121 = ssub.s32 256, 256
          %122 = vsyncadd [#allocation7], %s121
          %s123 = sshll.u32 [#allocation6], 4
          %s124 = int_to_ptr.vmem [resolvable:$true] %s123
          %129 = dma.hbm_to_vmem [thread:$0]  %s1, 256, %s124, [#allocation7], 128, 128, 8
        $region16: #{tpu_custom_call.1} parent=11 // pred_fallthru
          _
      $region12: #{tpu_custom_call.1} parent=5 // pred_fallthru
        _
      %p130 = scmp.lt.s32.totalorder %s15, 2
      // Predicated region
      $region17: #{tpu_custom_call.1} parent=5 // pred_check
        %p131 = pneg %p130
      $region18: #{tpu_custom_call.1} parent=5 // pred_check_branch
        %133 = sbr.rel (%p131) target = $region20
      $region19: #{tpu_custom_call.1} parent=5 // pred_region
        // Predicated region
        $region21: #{tpu_custom_call.1} parent=19 // pred_check
          %p134 = pneg %p49
        $region22: #{tpu_custom_call.1} parent=19 // pred_check_branch
          %136 = sbr.rel (%p134) target = $region24
        $region23: #{tpu_custom_call.1} parent=19 // pred_region
          %s137 = sand.u32 %s39, 1
          %s138 = scalar_lea.sflag [#allocation4], %s137
          %s139 = sand.u32 %s39, 1
          %s140 = smul.addr %s139, 192
          %s141 = scalar_lea.vmem [#allocation3], %s140
          %s142 = smul.u32 3, %s23
          %s144 = ssub.s32 3072, 3072
          %145 = vsyncadd %s138, %s144
          %s146 = smul.addr %s142, 32
          %s147 = sadd.s32 %s22, %s146
          %s148 = smul.addr %s147, 64
          %s149 = scalar_lea.hbm %s0, %s148
          %s150 = sshll.u32 %s141, 4
          %s151 = int_to_ptr.vmem [resolvable:$true] %s150
          %156 = dma.hbm_to_vmem [thread:$0]  %s149, 3072, %s151, %s138, 128, 64, 4
        $region24: #{tpu_custom_call.1} parent=19 // pred_fallthru
          _
      $region20: #{tpu_custom_call.1} parent=5 // pred_fallthru
        _
      %p157 = scmp.le.s32.totalorder 1, %s15
      %p158 = scmp.lt.s32.totalorder %s15, 3
      %p159 = pnand %p157, %p158
      %p160 = pneg %p159
      // Predicated region
      $region25: #{tpu_custom_call.1} parent=5 // pred_check
        _
      $region26: #{tpu_custom_call.1} parent=5 // pred_check_branch
        %162 = sbr.rel (%p159) target = $region28
      $region27: #{tpu_custom_call.1} parent=5 // pred_region
        %s163 = ssub.s32 %s15, 1
        %s164 = sand.u32 %s42, 1
        %s165 = scalar_lea.sflag [#allocation4], %s164
        %s166 = sand.u32 %s42, 1
        %s167 = smul.addr %s166, 192
        %s168 = scalar_lea.vmem [#allocation3], %s167
        // Predicated region
        $region29: #{tpu_custom_call.1} parent=27 // pred_check
          %p169 = pneg %p55
        $region30: #{tpu_custom_call.1} parent=27 // pred_check_branch
          %171 = sbr.rel (%p169) target = $region32
        $region31: #{tpu_custom_call.1} parent=27 // pred_region
          %172 = dma.done %s165, 3072
        $region32: #{tpu_custom_call.1} parent=27 // pred_fallthru
          _
        // Predicated region
        $region33: #{tpu_custom_call.1} parent=27 // pred_check
          %p173 = pneg %p76
        $region34: #{tpu_custom_call.1} parent=27 // pred_check_branch
          %175 = sbr.rel (%p173) target = $region36
        $region35: #{tpu_custom_call.1} parent=27 // pred_region
          %176 = dma.done [#allocation7], 256
        $region36: #{tpu_custom_call.1} parent=27 // pred_fallthru
          _
        %s177 = sand.u32 %s42, 1
        %s178 = scalar_lea.sflag [#allocation4], %s177
        %s179 = sand.u32 %s42, 1
        %s180 = smul.addr %s179, 192
        %s181 = scalar_lea.vmem [#allocation3], %s180
        %p182 = pneg %p55
        %p183 = pneg %p52
        %p184 = pneg %p76
        %p185 = pneg %p73
        %p186 = pneg %p102
        %p187 = pneg %p99
        %s188 = sand.u32 %s89, 1
        %s189 = scalar_lea.sflag [#allocation5], %s188
        %s190 = sand.u32 %s89, 1
        %s191 = smul.addr %s190, 16
        %s192 = scalar_lea.vmem [#allocation8], %s191
        %s193 = smul.u32 3, %s25
        %p194 = scmp.eq.s32.totalorder %s25, 0
        // Predicated region
        $region37: #{tpu_custom_call.1} parent=27 // pred_check
          %p195 = pneg %p194
        $region38: #{tpu_custom_call.1} parent=27 // pred_check_branch
          %197 = sbr.rel (%p195) target = $region40
        $region39: #{tpu_custom_call.1} parent=27 // pred_region
          %198 = vst [vmem:[#allocation2] sm:$0xff] 0.0
          %199 = vst [vmem:[#allocation2 + $0x8] sm:$0xff] 0.0
          %200 = vst [vmem:[#allocation2 + $0x10] sm:$0xff] 0.0
          %201 = vst [vmem:[#allocation2 + $0x18] sm:$0xff] 0.0
          %202 = vst [vmem:[#allocation2 + $0x20] sm:$0xff] 0.0
          %203 = vst [vmem:[#allocation2 + $0x28] sm:$0xff] 0.0
          %204 = vst [vmem:[#allocation2 + $0x30] sm:$0xff] 0.0
          %205 = vst [vmem:[#allocation2 + $0x38] sm:$0xff] 0.0
          %206 = vst [vmem:[#allocation2 + $0x40] sm:$0xff] 0.0
          %207 = vst [vmem:[#allocation2 + $0x48] sm:$0xff] 0.0
          %208 = vst [vmem:[#allocation2 + $0x50] sm:$0xff] 0.0
          %209 = vst [vmem:[#allocation2 + $0x58] sm:$0xff] 0.0
          %210 = vst [vmem:[#allocation2 + $0x60] sm:$0xff] 0.0
          %211 = vst [vmem:[#allocation2 + $0x68] sm:$0xff] 0.0
          %212 = vst [vmem:[#allocation2 + $0x70] sm:$0xff] 0.0
          %213 = vst [vmem:[#allocation2 + $0x78] sm:$0xff] 0.0
        $region40: #{tpu_custom_call.1} parent=27 // pred_fallthru
          _
        %v214 = vld [vmem:[#allocation2] sm:$0xff]
        %v215 = vld [vmem:[#allocation2 + $0x8] sm:$0xff]
        %v216 = vld [vmem:[#allocation2 + $0x10] sm:$0xff]
        %v217 = vld [vmem:[#allocation2 + $0x18] sm:$0xff]
        %v218 = vld [vmem:[#allocation2 + $0x20] sm:$0xff]
        %v219 = vld [vmem:[#allocation2 + $0x28] sm:$0xff]
        %v220 = vld [vmem:[#allocation2 + $0x30] sm:$0xff]
        %v221 = vld [vmem:[#allocation2 + $0x38] sm:$0xff]
        %v222 = vld [vmem:[#allocation2 + $0x40] sm:$0xff]
        %v223 = vld [vmem:[#allocation2 + $0x48] sm:$0xff]
        %v224 = vld [vmem:[#allocation2 + $0x50] sm:$0xff]
        %v225 = vld [vmem:[#allocation2 + $0x58] sm:$0xff]
        %v226 = vld [vmem:[#allocation2 + $0x60] sm:$0xff]
        %v227 = vld [vmem:[#allocation2 + $0x68] sm:$0xff]
        %v228 = vld [vmem:[#allocation2 + $0x70] sm:$0xff]
        %v229 = vld [vmem:[#allocation2 + $0x78] sm:$0xff]
        %v230 = vld [vmem:[%s168] sm:$0xf]
        %v231 = vld [vmem:[%s168 + $0x4] sm:$0xf]
        %v232 = vld [vmem:[%s168 + $0x8] sm:$0xf]
        %v233 = vld [vmem:[%s168 + $0xc] sm:$0xf]
        %v234 = vld [vmem:[%s168 + $0x10] sm:$0xf]
        %v235 = vld [vmem:[%s168 + $0x14] sm:$0xf]
        %v236 = vld [vmem:[%s168 + $0x18] sm:$0xf]
        %v237 = vld [vmem:[%s168 + $0x1c] sm:$0xf]
        %v238 = vld [vmem:[%s168 + $0x20] sm:$0xf]
        %v239 = vld [vmem:[%s168 + $0x24] sm:$0xf]
        %v240 = vld [vmem:[%s168 + $0x28] sm:$0xf]
        %v241 = vld [vmem:[%s168 + $0x2c] sm:$0xf]
        %v242 = vld [vmem:[%s168 + $0x30] sm:$0xf]
        %v243 = vld [vmem:[%s168 + $0x34] sm:$0xf]
        %v244 = vld [vmem:[%s168 + $0x38] sm:$0xf]
        %v245 = vld [vmem:[%s168 + $0x3c] sm:$0xf]
        %v246 = vld [vmem:[%s168 + $0x40] sm:$0xf]
        %v247 = vld [vmem:[%s168 + $0x44] sm:$0xf]
        %v248 = vld [vmem:[%s168 + $0x48] sm:$0xf]
        %v249 = vld [vmem:[%s168 + $0x4c] sm:$0xf]
        %v250 = vld [vmem:[%s168 + $0x50] sm:$0xf]
        %v251 = vld [vmem:[%s168 + $0x54] sm:$0xf]
        %v252 = vld [vmem:[%s168 + $0x58] sm:$0xf]
        %v253 = vld [vmem:[%s168 + $0x5c] sm:$0xf]
        %v254 = vld [vmem:[%s168 + $0x60] sm:$0xf]
        %v255 = vld [vmem:[%s168 + $0x64] sm:$0xf]
        %v256 = vld [vmem:[%s168 + $0x68] sm:$0xf]
        %v257 = vld [vmem:[%s168 + $0x6c] sm:$0xf]
        %v258 = vld [vmem:[%s168 + $0x70] sm:$0xf]
        %v259 = vld [vmem:[%s168 + $0x74] sm:$0xf]
        %v260 = vld [vmem:[%s168 + $0x78] sm:$0xf]
        %v261 = vld [vmem:[%s168 + $0x7c] sm:$0xf]
        %v262 = vld [vmem:[%s168 + $0x80] sm:$0xf]
        %v263 = vld [vmem:[%s168 + $0x84] sm:$0xf]
        %v264 = vld [vmem:[%s168 + $0x88] sm:$0xf]
        %v265 = vld [vmem:[%s168 + $0x8c] sm:$0xf]
        %v266 = vld [vmem:[%s168 + $0x90] sm:$0xf]
        %v267 = vld [vmem:[%s168 + $0x94] sm:$0xf]
        %v268 = vld [vmem:[%s168 + $0x98] sm:$0xf]
        %v269 = vld [vmem:[%s168 + $0x9c] sm:$0xf]
        %v270 = vld [vmem:[%s168 + $0xa0] sm:$0xf]
        %v271 = vld [vmem:[%s168 + $0xa4] sm:$0xf]
        %v272 = vld [vmem:[%s168 + $0xa8] sm:$0xf]
        %v273 = vld [vmem:[%s168 + $0xac] sm:$0xf]
        %v274 = vld [vmem:[%s168 + $0xb0] sm:$0xf]
        %v275 = vld [vmem:[%s168 + $0xb4] sm:$0xf]
        %v276 = vld [vmem:[%s168 + $0xb8] sm:$0xf]
        %v277 = vld [vmem:[%s168 + $0xbc] sm:$0xf]
        %v278 = vunpack.c.l.bf16 %v230
        %v279 = vunpack.c.l.bf16 %v231
        %v280 = vunpack.c.l.bf16 %v232
        %v281 = vunpack.c.l.bf16 %v233
        %v282 = vunpack.c.l.bf16 %v234
        %v283 = vunpack.c.l.bf16 %v235
        %v284 = vunpack.c.l.bf16 %v236
        %v285 = vunpack.c.l.bf16 %v237
        %v286 = vunpack.c.l.bf16 %v238
        %v287 = vunpack.c.l.bf16 %v239
        %v288 = vunpack.c.l.bf16 %v240
        %v289 = vunpack.c.l.bf16 %v241
        %v290 = vunpack.c.l.bf16 %v242
        %v291 = vunpack.c.l.bf16 %v243
        %v292 = vunpack.c.l.bf16 %v244
        %v293 = vunpack.c.l.bf16 %v245
        %v294 = vunpack.c.l.bf16 %v246
        %v295 = vunpack.c.l.bf16 %v247
        %v296 = vunpack.c.l.bf16 %v248
        %v297 = vunpack.c.l.bf16 %v249
        %v298 = vunpack.c.l.bf16 %v250
        %v299 = vunpack.c.l.bf16 %v251
        %v300 = vunpack.c.l.bf16 %v252
        %v301 = vunpack.c.l.bf16 %v253
        %v302 = vunpack.c.l.bf16 %v254
        %v303 = vunpack.c.l.bf16 %v255
        %v304 = vunpack.c.l.bf16 %v256
        %v305 = vunpack.c.l.bf16 %v257
        %v306 = vunpack.c.l.bf16 %v258
        %v307 = vunpack.c.l.bf16 %v259
        %v308 = vunpack.c.l.bf16 %v260
        %v309 = vunpack.c.l.bf16 %v261
        %v310 = vunpack.c.l.bf16 %v262
        %v311 = vunpack.c.l.bf16 %v263
        %v312 = vunpack.c.l.bf16 %v264
        %v313 = vunpack.c.l.bf16 %v265
        %v314 = vunpack.c.l.bf16 %v266
        %v315 = vunpack.c.l.bf16 %v267
        %v316 = vunpack.c.l.bf16 %v268
        %v317 = vunpack.c.l.bf16 %v269
        %v318 = vunpack.c.l.bf16 %v270
        %v319 = vunpack.c.l.bf16 %v271
        %v320 = vunpack.c.l.bf16 %v272
        %v321 = vunpack.c.l.bf16 %v273
        %v322 = vunpack.c.l.bf16 %v274
        %v323 = vunpack.c.l.bf16 %v275
        %v324 = vunpack.c.l.bf16 %v276
        %v325 = vunpack.c.l.bf16 %v277
        %v326 = vadd.f32 %v278, %v294
        %v327 = vadd.f32 %v326, %v310
        %v328 = vadd.f32 %v279, %v295
        %v329 = vadd.f32 %v328, %v311
        %v330 = vadd.f32 %v280, %v296
        %v331 = vadd.f32 %v330, %v312
        %v332 = vadd.f32 %v281, %v297
        %v333 = vadd.f32 %v332, %v313
        %v334 = vadd.f32 %v282, %v298
        %v335 = vadd.f32 %v334, %v314
        %v336 = vadd.f32 %v283, %v299
        %v337 = vadd.f32 %v336, %v315
        %v338 = vadd.f32 %v284, %v300
        %v339 = vadd.f32 %v338, %v316
        %v340 = vadd.f32 %v285, %v301
        %v341 = vadd.f32 %v340, %v317
        %v342 = vadd.f32 %v286, %v302
        %v343 = vadd.f32 %v342, %v318
        %v344 = vadd.f32 %v287, %v303
        %v345 = vadd.f32 %v344, %v319
        %v346 = vadd.f32 %v288, %v304
        %v347 = vadd.f32 %v346, %v320
        %v348 = vadd.f32 %v289, %v305
        %v349 = vadd.f32 %v348, %v321
        %v350 = vadd.f32 %v290, %v306
        %v351 = vadd.f32 %v350, %v322
        %v352 = vadd.f32 %v291, %v307
        %v353 = vadd.f32 %v352, %v323
        %v354 = vadd.f32 %v292, %v308
        %v355 = vadd.f32 %v354, %v324
        %v356 = vadd.f32 %v293, %v309
        %v357 = vadd.f32 %v356, %v325
        %v358 = vadd.f32 %v214, %v327
        %v359 = vadd.f32 %v215, %v329
        %v360 = vadd.f32 %v216, %v331
        %v361 = vadd.f32 %v217, %v333
        %v362 = vadd.f32 %v218, %v335
        %v363 = vadd.f32 %v219, %v337
        %v364 = vadd.f32 %v220, %v339
        %v365 = vadd.f32 %v221, %v341
        %v366 = vadd.f32 %v222, %v343
        %v367 = vadd.f32 %v223, %v345
        %v368 = vadd.f32 %v224, %v347
        %v369 = vadd.f32 %v225, %v349
        %v370 = vadd.f32 %v226, %v351
        %v371 = vadd.f32 %v227, %v353
        %v372 = vadd.f32 %v228, %v355
        %v373 = vadd.f32 %v229, %v357
        %374 = vst [vmem:[#allocation2] sm:$0xff] %v358
        %375 = vst [vmem:[#allocation2 + $0x8] sm:$0xff] %v359
        %376 = vst [vmem:[#allocation2 + $0x10] sm:$0xff] %v360
        %377 = vst [vmem:[#allocation2 + $0x18] sm:$0xff] %v361
        %378 = vst [vmem:[#allocation2 + $0x20] sm:$0xff] %v362
        %379 = vst [vmem:[#allocation2 + $0x28] sm:$0xff] %v363
        %380 = vst [vmem:[#allocation2 + $0x30] sm:$0xff] %v364
        %381 = vst [vmem:[#allocation2 + $0x38] sm:$0xff] %v365
        %382 = vst [vmem:[#allocation2 + $0x40] sm:$0xff] %v366
        %383 = vst [vmem:[#allocation2 + $0x48] sm:$0xff] %v367
        %384 = vst [vmem:[#allocation2 + $0x50] sm:$0xff] %v368
        %385 = vst [vmem:[#allocation2 + $0x58] sm:$0xff] %v369
        %386 = vst [vmem:[#allocation2 + $0x60] sm:$0xff] %v370
        %387 = vst [vmem:[#allocation2 + $0x68] sm:$0xff] %v371
        %388 = vst [vmem:[#allocation2 + $0x70] sm:$0xff] %v372
        %389 = vst [vmem:[#allocation2 + $0x78] sm:$0xff] %v373
        // Predicated region
        $region41: #{tpu_custom_call.1} parent=27 // pred_check
          %p390 = pneg %p194
        $region42: #{tpu_custom_call.1} parent=27 // pred_check_branch
          %392 = sbr.rel (%p390) target = $region44
        $region43: #{tpu_custom_call.1} parent=27 // pred_region
          %v393 = vld [vmem:[#allocation6] sm:$0xff]
          %v394 = vld [vmem:[#allocation6 + $0x8] sm:$0xff]
          %v395 = vld [vmem:[#allocation2] sm:$0xff]
          %v396 = vld [vmem:[#allocation2 + $0x8] sm:$0xff]
          %v397 = vld [vmem:[#allocation2 + $0x10] sm:$0xff]
          %v398 = vld [vmem:[#allocation2 + $0x18] sm:$0xff]
          %v399 = vld [vmem:[#allocation2 + $0x20] sm:$0xff]
          %v400 = vld [vmem:[#allocation2 + $0x28] sm:$0xff]
          %v401 = vld [vmem:[#allocation2 + $0x30] sm:$0xff]
          %v402 = vld [vmem:[#allocation2 + $0x38] sm:$0xff]
          %v403 = vld [vmem:[#allocation2 + $0x40] sm:$0xff]
          %v404 = vld [vmem:[#allocation2 + $0x48] sm:$0xff]
          %v405 = vld [vmem:[#allocation2 + $0x50] sm:$0xff]
          %v406 = vld [vmem:[#allocation2 + $0x58] sm:$0xff]
          %v407 = vld [vmem:[#allocation2 + $0x60] sm:$0xff]
          %v408 = vld [vmem:[#allocation2 + $0x68] sm:$0xff]
          %v409 = vld [vmem:[#allocation2 + $0x70] sm:$0xff]
          %v410 = vld [vmem:[#allocation2 + $0x78] sm:$0xff]
          %411 = vmatprep.subr.mxu0 0.0
          %412 = vmatpush1.msra.mxu0 %v410
          %413 = vmatprep.subr.mxu0 0.0
          %414 = vmatpush1.msra.mxu0 %v409
          %415 = vmatprep.subr.mxu0 0.0
          %416 = vmatpush1.msra.mxu0 %v408
          %417 = vmatprep.subr.mxu0 0.0
          %418 = vmatpush1.msra.mxu0 %v407
          %419 = vmatprep.subr.mxu0 0.0
          %420 = vmatpush1.msra.mxu0 %v406
          %421 = vmatprep.subr.mxu0 0.0
          %422 = vmatpush1.msra.mxu0 %v405
          %423 = vmatprep.subr.mxu0 0.0
          %424 = vmatpush1.msra.mxu0 %v404
          %425 = vmatprep.subr.mxu0 0.0
          %426 = vmatpush1.msra.mxu0 %v403
          %427 = vmatprep.subr.mxu0 0.0
          %428 = vmatpush1.msra.mxu0 %v402
          %429 = vmatprep.subr.mxu0 0.0
          %430 = vmatpush1.msra.mxu0 %v401
          %431 = vmatprep.subr.mxu0 0.0
          %432 = vmatpush1.msra.mxu0 %v400
          %433 = vmatprep.subr.mxu0 0.0
          %434 = vmatpush1.msra.mxu0 %v399
          %435 = vmatprep.subr.mxu0 0.0
          %436 = vmatpush1.msra.mxu0 %v398
          %437 = vmatprep.subr.mxu0 0.0
          %438 = vmatpush1.msra.mxu0 %v397
          %439 = vmatprep.subr.mxu0 0.0
          %440 = vmatpush1.msra.mxu0 %v396
          %441 = vmatprep.subr.mxu0 0.0
          %442 = vmatpush1.msra.mxu0 %v395
          %443 = vmatprep.subr.mxu0 0.0
          %444 = vmatpush2.msra.mxu0 0.0
          %445 = vmatprep.subr.mxu0 0.0
          %446 = vmatpush2.msra.mxu0 0.0
          %447 = vmatprep.subr.mxu0 0.0
          %448 = vmatpush2.msra.mxu0 0.0
          %449 = vmatprep.subr.mxu0 0.0
          %450 = vmatpush2.msra.mxu0 0.0
          %451 = vmatprep.subr.mxu0 0.0
          %452 = vmatpush2.msra.mxu0 0.0
          %453 = vmatprep.subr.mxu0 0.0
          %454 = vmatpush2.msra.mxu0 0.0
          %455 = vmatprep.subr.mxu0 0.0
          %456 = vmatpush2.msra.mxu0 0.0
          %457 = vmatprep.subr.mxu0 0.0
          %458 = vmatpush2.msra.mxu0 0.0
          %459 = vmatprep.subr.mxu0 0.0
          %460 = vmatpush2.msra.mxu0 0.0
          %461 = vmatprep.subr.mxu0 0.0
          %462 = vmatpush2.msra.mxu0 0.0
          %463 = vmatprep.subr.mxu0 0.0
          %464 = vmatpush2.msra.mxu0 0.0
          %465 = vmatprep.subr.mxu0 0.0
          %466 = vmatpush2.msra.mxu0 0.0
          %467 = vmatprep.subr.mxu0 0.0
          %468 = vmatpush2.msra.mxu0 0.0
          %469 = vmatprep.subr.mxu0 0.0
          %470 = vmatpush2.msra.mxu0 0.0
          %471 = vmatprep.subr.mxu0 0.0
          %472 = vmatpush2.msra.mxu0 0.0
          %473 = vmatprep.subr.mxu0 0.0
          %474 = vmatpush2.msra.mxu0 0.0
          %475 = vmatprep.mubr.f32.mxu0 0.0
          %476 = vmatmul.mubr.f32.gmra.mxu0 %v393
          %v477 = vpop.f32.mrf.mxu0
          %v478 = vadd.f32 0.0, %v477
          %v479 = vpop.f32.mrf.mxu0
          %480 = vmatprep.mubr.f32.mxu0 0.0
          %481 = vmatmul.mubr.f32.gmra.mxu0 %v394
          %v482 = vpop.f32.mrf.mxu0
          %v483 = vadd.f32 0.0, %v482
          %v484 = vpop.f32.mrf.mxu0
          %485 = vdwg.mxu0
          %486 = vst [vmem:[%s192] sm:$0xff] %v478
          %487 = vst [vmem:[%s192 + $0x8] sm:$0xff] %v483
        $region44: #{tpu_custom_call.1} parent=27 // pred_fallthru
          _
        %s488 = sand.u32 %s89, 1
        %s489 = scalar_lea.sflag [#allocation5], %s488
        %s490 = sand.u32 %s89, 1
        %s491 = smul.addr %s490, 16
        %s492 = scalar_lea.vmem [#allocation8], %s491
        // Predicated region
        $region45: #{tpu_custom_call.1} parent=27 // pred_check
          %p493 = pneg %p99
        $region46: #{tpu_custom_call.1} parent=27 // pred_check_branch
          %495 = sbr.rel (%p493) target = $region48
        $region47: #{tpu_custom_call.1} parent=27 // pred_region
          %s497 = ssub.s32 256, 256
          %498 = vsyncadd %s489, %s497
          %s499 = smul.addr %s24, 128
          %s500 = scalar_lea.hbm %s2, %s499
          %s501 = sshll.u32 %s492, 4
          %s502 = int_to_ptr.vmem [resolvable:$true] %s501
          %507 = dma.vmem_to_hbm [thread:$0]  %s502, 256, %s500, %s489, 128, 256, 8
        $region48: #{tpu_custom_call.1} parent=27 // pred_fallthru
          _
      $region28: #{tpu_custom_call.1} parent=5 // pred_fallthru
        _
      %p508 = scmp.le.s32.totalorder 2, %s15
      // Predicated region
      $region49: #{tpu_custom_call.1} parent=5 // pred_check
        %p509 = pneg %p508
      $region50: #{tpu_custom_call.1} parent=5 // pred_check_branch
        %511 = sbr.rel (%p509) target = $region52
      $region51: #{tpu_custom_call.1} parent=5 // pred_region
        %s512 = ssub.s32 %s15, 2
        // Predicated region
        $region53: #{tpu_custom_call.1} parent=51 // pred_check
          %p513 = pneg %p105
        $region54: #{tpu_custom_call.1} parent=51 // pred_check_branch
          %515 = sbr.rel (%p513) target = $region56
        $region55: #{tpu_custom_call.1} parent=51 // pred_region
          %s516 = sand.u32 %s90, 1
          %s517 = scalar_lea.sflag [#allocation5], %s516
          %s518 = sand.u32 %s90, 1
          %s519 = smul.addr %s518, 16
          %s520 = scalar_lea.vmem [#allocation8], %s519
          %521 = dma.done %s517, 256
        $region56: #{tpu_custom_call.1} parent=51 // pred_fallthru
          _
      $region52: #{tpu_custom_call.1} parent=5 // pred_fallthru
        _
    $region6: #{tpu_custom_call.1} parent=1 // loop_footer
      %s19 = sadd.s32 1, %s15
    $region7: #{tpu_custom_call.1} parent=1 // loop_footer_branch
      %14 = sbr.rel target = $region3
    $region8: #{tpu_custom_call.1} parent=1 // loop_exit
      _
    %522 = vsyncpa [#allocation4], 1
    %s523 = scalar_lea.sflag [#allocation4], 1
    %524 = vsyncpa %s523, 1
    %525 = vsyncpa [#allocation7], 1
    %526 = vsyncpa [#allocation5], 1
    %s527 = scalar_lea.sflag [#allocation5], 1
    %528 = vsyncpa %s527, 1

</llo_original>
